<compile_context>
chip_gen: v7x
topology: tpu7x:2x2x1
jax: 0.10.0
libtpu: 0.0.40
codegen_flags: <defaults>
</compile_context>

<pallas_src>
import jax
import jax.numpy as jnp
from jax.experimental import pallas as pl
from jax.experimental.pallas import tpu as pltpu

# TODO(synk): the pretrained AutoModel transformer backbone is not translated;
# the kernel consumes its hidden-state output (B, L, H) directly.


def _head_kernel(x_ref, ww_ref, wb_ref, vw_ref, vb_ref, lw_ref, lb_ref, o_ref):
    # One grid step handles `bt` batch elements.
    bt, L, H = x_ref.shape
    x = x_ref[...]                                   # (Bt, L, H) f32

    # -- AttentionHead.W (Linear H->H) + tanh --------------------------------
    # Single (Bt*L, H) @ (H, H) bf16 MXU matmul, f32 accumulation.
    x2d = x.reshape(bt * L, H).astype(jnp.bfloat16)
    att = jnp.tanh(
        jnp.dot(x2d, ww_ref[...], preferred_element_type=jnp.float32)
        + wb_ref[...]                                # (1, H) broadcasts
    )                                                # (Bt*L, H) f32

    # -- AttentionHead.V (Linear H->1) ---------------------------------------
    # VPU multiply + cross-lane reduce (an N=1 matmul would waste the MXU).
    score = jnp.sum(att * vw_ref[...], axis=-1, keepdims=True)   # (Bt*L, 1)
    score = score.reshape(bt, L, 1) + vb_ref[0, 0]

    # softmax over the sequence axis (torch dim=1).  The bias above cancels
    # under the max-shift (softmax is shift invariant) but it is free to keep.
    score = score - jnp.max(score, axis=1, keepdims=True)
    p = jnp.exp(score)                               # (Bt, L, 1)
    p = p * pl.reciprocal(jnp.sum(p, axis=1, keepdims=True), approx=True)

    # attention-weighted sum over the sequence -> context vector (f32 x).
    ctx = jnp.sum(p * x, axis=1)                     # (Bt, H)

    # dropout(0.1) is identity at inference.
    # final Linear(H->1): VPU multiply + lane-reduce.
    out = jnp.sum(ctx * lw_ref[...], axis=-1) + lb_ref[0, 0]     # (Bt,)
    o_ref[...] = out.reshape(1, 1, bt)               # lane-contiguous store


def custom_model_head(x, ww, wb, vw, vb, lw, lb, *, block_b=4):
    """x: (B, L, H) f32 hidden states; returns (B, 1) f32."""
    B, L, H = x.shape
    bt = max(1, min(block_b, B))
    num_tiles = -(-B // bt)
    b_pad = num_tiles * bt
    if b_pad != B:
        x = jnp.pad(x, ((0, b_pad - B), (0, 0), (0, 0)))

    # Weight layouts for the kernel:
    #   ww : (H, H) bf16 (in_features, out_features)
    #   wb/vw/lw : (1, H) f32 row vectors, vb/lb : (1, 1) f32.
    ww = jnp.asarray(ww).astype(jnp.bfloat16)
    wb = jnp.asarray(wb, jnp.float32).reshape(1, H)
    vw = jnp.asarray(vw, jnp.float32).reshape(1, H)
    vb = jnp.asarray(vb, jnp.float32).reshape(1, 1)
    lw = jnp.asarray(lw, jnp.float32).reshape(1, H)
    lb = jnp.asarray(lb, jnp.float32).reshape(1, 1)

    out = pl.pallas_call(
        _head_kernel,
        out_shape=jax.ShapeDtypeStruct((num_tiles, 1, bt), jnp.float32),
        grid_spec=pltpu.PrefetchScalarGridSpec(
            num_scalar_prefetch=0,
            grid=(num_tiles,),
            in_specs=[
                pl.BlockSpec((bt, L, H), lambda b: (b, 0, 0)),   # x
                pl.BlockSpec((H, H), lambda b: (0, 0)),          # W weight
                pl.BlockSpec((1, H), lambda b: (0, 0)),          # W bias
                pl.BlockSpec((1, H), lambda b: (0, 0)),          # V weight (row)
                pl.BlockSpec((1, 1), lambda b: (0, 0)),          # V bias
                pl.BlockSpec((1, H), lambda b: (0, 0)),          # linear weight (row)
                pl.BlockSpec((1, 1), lambda b: (0, 0)),          # linear bias
            ],
            out_specs=pl.BlockSpec((1, 1, bt), lambda b: (b, 0, 0)),
        ),
        compiler_params=pltpu.CompilerParams(
            dimension_semantics=("parallel",),
            vmem_limit_bytes=64 * 1024 * 1024,
        ),
    )(x, ww, wb, vw, vb, lw, lb)

    return out.reshape(b_pad)[:B].reshape(B, 1)


def _reference(x, ww, wb, vw, vb, lw, lb):
    # Same math, with the same bf16 cast for the main matmul as the kernel.
    att = jnp.tanh(
        jnp.einsum(
            "blh,hd->bld",
            x.astype(jnp.bfloat16), jnp.asarray(ww).astype(jnp.bfloat16),
            preferred_element_type=jnp.float32,
        )
        + jnp.asarray(wb, jnp.float32).reshape(1, 1, -1)
    )
    score = jnp.einsum("blh,h->bl", att, jnp.asarray(vw, jnp.float32).reshape(-1))
    score = score[..., None] + jnp.asarray(vb, jnp.float32).reshape(())
    p = jax.nn.softmax(score, axis=1)
    ctx = jnp.sum(p * x, axis=1)                                   # (B, H)
    return ctx @ jnp.asarray(lw, jnp.float32).reshape(-1, 1) + \
        jnp.asarray(lb, jnp.float32).reshape(1, 1)


if __name__ == "__main__":
    key = jax.random.PRNGKey(0)
    B, L, H = 2, 8, 32                                             # small synthetic shapes

    ks = jax.random.split(key, 7)
    x = jax.random.normal(ks[0], (B, L, H), dtype=jnp.float32)
    # Linear weights stored pre-transposed as (in_features, out_features) / vectors.
    ww = jax.random.normal(ks[1], (H, H), dtype=jnp.float32) * 0.05
    wb = jax.random.normal(ks[2], (H,), dtype=jnp.float32) * 0.05
    vw = jax.random.normal(ks[3], (H,), dtype=jnp.float32) * 0.05
    vb = jax.random.normal(ks[4], (), dtype=jnp.float32) * 0.05
    lw = jax.random.normal(ks[5], (H,), dtype=jnp.float32) * 0.05
    lb = jax.random.normal(ks[6], (), dtype=jnp.float32) * 0.05

    out = custom_model_head(x, ww, wb, vw, vb, lw, lb, block_b=2)
    out = jax.block_until_ready(out)
    ref = _reference(x, ww, wb, vw, vb, lw, lb)
    assert out.shape == (B, 1), out.shape
    assert jnp.allclose(out, ref, atol=5e-3, rtol=5e-3), (out, ref)

    # Also exercise the multi-tile grid + batch-padding path (B=3, Bt=2).
    x3 = jnp.concatenate([x, x[:1]], axis=0)
    out3 = jax.block_until_ready(
        custom_model_head(x3, ww, wb, vw, vb, lw, lb, block_b=2))
    ref3 = _reference(x3, ww, wb, vw, vb, lw, lb)
    assert out3.shape == (3, 1), out3.shape
    assert jnp.allclose(out3, ref3, atol=5e-3, rtol=5e-3), (out3, ref3)

    print("KERNEL_OK")
</pallas_src>

<mosaic_0001>
module attributes {stable_mosaic.version = 11 : i64} {
  func.func @_head_kernel(%arg0: i32, %arg1: memref<2x8x32xf32, #tpu.memory_space<vmem>>, %arg2: memref<32x32xbf16, #tpu.memory_space<vmem>>, %arg3: memref<1x32xf32, #tpu.memory_space<vmem>>, %arg4: memref<1x32xf32, #tpu.memory_space<vmem>>, %arg5: memref<1x1xf32, #tpu.memory_space<vmem>>, %arg6: memref<1x32xf32, #tpu.memory_space<vmem>>, %arg7: memref<1x1xf32, #tpu.memory_space<vmem>>, %arg8: memref<1x1x2xf32, #tpu.memory_space<vmem>>) attributes {dimension_semantics = [#tpu.dimension_semantics<parallel>], iteration_bounds = array<i64: 1>, scalar_prefetch = 0 : i64, scratch_operands = 0 : i64, tpu.core_type = #tpu.core_type<tc>, window_params = [{transform_indices = @transform_0, window_bounds = array<i64: 2, 8, 32>}, {pipeline_mode = #tpu.pipeline_mode<synchronous>, transform_indices = @transform_1, window_bounds = array<i64: 32, 32>}, {pipeline_mode = #tpu.pipeline_mode<synchronous>, transform_indices = @transform_2, window_bounds = array<i64: 1, 32>}, {pipeline_mode = #tpu.pipeline_mode<synchronous>, transform_indices = @transform_3, window_bounds = array<i64: 1, 32>}, {pipeline_mode = #tpu.pipeline_mode<synchronous>, transform_indices = @transform_4, window_bounds = array<i64: 1, 1>}, {pipeline_mode = #tpu.pipeline_mode<synchronous>, transform_indices = @transform_5, window_bounds = array<i64: 1, 32>}, {pipeline_mode = #tpu.pipeline_mode<synchronous>, transform_indices = @transform_6, window_bounds = array<i64: 1, 1>}, {transform_indices = @transform_7, window_bounds = array<i64: 1, 1, 2>}]} {
    %c0 = arith.constant 0 : index
    %c0_0 = arith.constant 0 : index
    %c0_1 = arith.constant 0 : index
    %0 = vector.load %arg1[%c0, %c0_0, %c0_1] : memref<2x8x32xf32, #tpu.memory_space<vmem>>, vector<2x8x32xf32>
    %1 = vector.shape_cast %0 : vector<2x8x32xf32> to vector<16x32xf32>
    %2 = arith.truncf %1 : vector<16x32xf32> to vector<16x32xbf16>
    %c0_2 = arith.constant 0 : index
    %c0_3 = arith.constant 0 : index
    %3 = vector.load %arg2[%c0_2, %c0_3] : memref<32x32xbf16, #tpu.memory_space<vmem>>, vector<32x32xbf16>
    %cst = arith.constant dense<0.000000e+00> : vector<16x32xf32>
    %4 = tpu.matmul %2, %3, %cst {dimension_numbers = #tpu.dot_dimension_numbers<[1], [0], [0], [1], [0, 0, 1, 1], [], []>} : vector<16x32xbf16>, vector<32x32xbf16>, vector<16x32xf32> -> vector<16x32xf32>
    %c0_4 = arith.constant 0 : index
    %c0_5 = arith.constant 0 : index
    %5 = vector.load %arg3[%c0_4, %c0_5] : memref<1x32xf32, #tpu.memory_space<vmem>>, vector<1x32xf32>
    %6 = vector.broadcast %5 : vector<1x32xf32> to vector<16x32xf32>
    %7 = arith.addf %4, %6 : vector<16x32xf32>
    %8 = math.tanh %7 : vector<16x32xf32>
    %c0_6 = arith.constant 0 : index
    %c0_7 = arith.constant 0 : index
    %9 = vector.load %arg4[%c0_6, %c0_7] : memref<1x32xf32, #tpu.memory_space<vmem>>, vector<1x32xf32>
    %10 = vector.broadcast %9 : vector<1x32xf32> to vector<16x32xf32>
    %11 = arith.mulf %8, %10 : vector<16x32xf32>
    %cst_8 = arith.constant dense<0.000000e+00> : vector<16xf32>
    %12 = vector.multi_reduction <add>, %11, %cst_8 [1] : vector<16x32xf32> to vector<16xf32>
    %13 = vector.shape_cast %12 : vector<16xf32> to vector<16x1xf32>
    %14 = vector.shape_cast %13 : vector<16x1xf32> to vector<2x8x1xf32>
    %c0_9 = arith.constant 0 : index
    %c0_10 = arith.constant 0 : index
    %15 = vector.load %arg5[%c0_9, %c0_10] : memref<1x1xf32, #tpu.memory_space<vmem>>, vector<1x1xf32>
    %16 = vector.extract %15[0, 0] : f32 from vector<1x1xf32>
    %17 = vector.broadcast %16 : f32 to vector<2x8x1xf32>
    %18 = arith.addf %14, %17 : vector<2x8x1xf32>
    %cst_11 = arith.constant dense<0xFF800000> : vector<2x1xf32>
    %19 = vector.multi_reduction <maximumf>, %18, %cst_11 [1] : vector<2x8x1xf32> to vector<2x1xf32>
    %20 = vector.shape_cast %19 : vector<2x1xf32> to vector<2x1x1xf32>
    %21 = vector.broadcast %20 : vector<2x1x1xf32> to vector<2x8x1xf32>
    %22 = arith.subf %18, %21 : vector<2x8x1xf32>
    %23 = math.exp %22 : vector<2x8x1xf32>
    %cst_12 = arith.constant dense<0.000000e+00> : vector<2x1xf32>
    %24 = vector.multi_reduction <add>, %23, %cst_12 [1] : vector<2x8x1xf32> to vector<2x1xf32>
    %25 = vector.shape_cast %24 : vector<2x1xf32> to vector<2x1x1xf32>
    %26 = tpu.reciprocal %25 {approx = true} : vector<2x1x1xf32> -> vector<2x1x1xf32>
    %27 = vector.broadcast %26 : vector<2x1x1xf32> to vector<2x8x1xf32>
    %28 = arith.mulf %23, %27 : vector<2x8x1xf32>
    %29 = vector.broadcast %28 : vector<2x8x1xf32> to vector<2x8x32xf32>
    %30 = arith.mulf %29, %0 : vector<2x8x32xf32>
    %cst_13 = arith.constant dense<0.000000e+00> : vector<2x32xf32>
    %31 = vector.multi_reduction <add>, %30, %cst_13 [1] : vector<2x8x32xf32> to vector<2x32xf32>
    %c0_14 = arith.constant 0 : index
    %c0_15 = arith.constant 0 : index
    %32 = vector.load %arg6[%c0_14, %c0_15] : memref<1x32xf32, #tpu.memory_space<vmem>>, vector<1x32xf32>
    %33 = vector.broadcast %32 : vector<1x32xf32> to vector<2x32xf32>
    %34 = arith.mulf %31, %33 : vector<2x32xf32>
    %cst_16 = arith.constant dense<0.000000e+00> : vector<2xf32>
    %35 = vector.multi_reduction <add>, %34, %cst_16 [1] : vector<2x32xf32> to vector<2xf32>
    %c0_17 = arith.constant 0 : index
    %c0_18 = arith.constant 0 : index
    %36 = vector.load %arg7[%c0_17, %c0_18] : memref<1x1xf32, #tpu.memory_space<vmem>>, vector<1x1xf32>
    %37 = vector.extract %36[0, 0] : f32 from vector<1x1xf32>
    %38 = vector.broadcast %37 : f32 to vector<2xf32>
    %39 = arith.addf %35, %38 : vector<2xf32>
    %40 = vector.shape_cast %39 : vector<2xf32> to vector<1x1x2xf32>
    %c0_19 = arith.constant 0 : index
    %c0_20 = arith.constant 0 : index
    %c0_21 = arith.constant 0 : index
    %41 = vector.load %arg8[%c0_19, %c0_20, %c0_21] : memref<1x1x2xf32, #tpu.memory_space<vmem>>, vector<1x1x2xf32>
    tpu.vector_store %arg8[%c0_19, %c0_20, %c0_21], %40 {strides = array<i32>} : memref<1x1x2xf32, #tpu.memory_space<vmem>>, vector<1x1x2xf32>,
    return
  }
  func.func @transform_0(%arg0: i32) -> (i32, i32, i32) {
    %c0_i32 = arith.constant 0 : i32
    %c0_i32_0 = arith.constant 0 : i32
    %c0_i32_1 = arith.constant 0 : i32
    return %arg0, %c0_i32, %c0_i32_0 : i32, i32, i32
  }
  func.func @transform_1(%arg0: i32) -> (i32, i32) {
    %c0_i32 = arith.constant 0 : i32
    %c0_i32_0 = arith.constant 0 : i32
    %c0_i32_1 = arith.constant 0 : i32
    return %c0_i32, %c0_i32_0 : i32, i32
  }
  func.func @transform_2(%arg0: i32) -> (i32, i32) {
    %c0_i32 = arith.constant 0 : i32
    %c0_i32_0 = arith.constant 0 : i32
    %c0_i32_1 = arith.constant 0 : i32
    return %c0_i32, %c0_i32_0 : i32, i32
  }
  func.func @transform_3(%arg0: i32) -> (i32, i32) {
    %c0_i32 = arith.constant 0 : i32
    %c0_i32_0 = arith.constant 0 : i32
    %c0_i32_1 = arith.constant 0 : i32
    return %c0_i32, %c0_i32_0 : i32, i32
  }
  func.func @transform_4(%arg0: i32) -> (i32, i32) {
    %c0_i32 = arith.constant 0 : i32
    %c0_i32_0 = arith.constant 0 : i32
    %c0_i32_1 = arith.constant 0 : i32
    return %c0_i32, %c0_i32_0 : i32, i32
  }
  func.func @transform_5(%arg0: i32) -> (i32, i32) {
    %c0_i32 = arith.constant 0 : i32
    %c0_i32_0 = arith.constant 0 : i32
    %c0_i32_1 = arith.constant 0 : i32
    return %c0_i32, %c0_i32_0 : i32, i32
  }
  func.func @transform_6(%arg0: i32) -> (i32, i32) {
    %c0_i32 = arith.constant 0 : i32
    %c0_i32_0 = arith.constant 0 : i32
    %c0_i32_1 = arith.constant 0 : i32
    return %c0_i32, %c0_i32_0 : i32, i32
  }
  func.func @transform_7(%arg0: i32) -> (i32, i32, i32) {
    %c0_i32 = arith.constant 0 : i32
    %c0_i32_0 = arith.constant 0 : i32
    %c0_i32_1 = arith.constant 0 : i32
    return %arg0, %c0_i32, %c0_i32_0 : i32, i32, i32
  }
}

</mosaic_0001>

<llo_original>
// kernel: tpu_custom_call.1
$region0: #{tpu_custom_call.1}
  #allocation0 [shape = 'u32[]', space=smem, size = 0x4, offset = 0x4, fixed_abs, tag = 'smem constant byte address 0x4 - core index']
  #allocation1 [shape = 'u32[144,128]{1,0:T(1,128)}', space=vmem, size = 0x12000, scoped, tag = 'internal scratch']
  #allocation2 [shape = 'f32[1,1]{1,0:T(1,128)S(1)}', space=vmem, size = 0x200, scoped, tag = 'scoped memory for tpu_custom_call.1']
  #allocation3 [shape = 'f32[1,1]{1,0:T(1,128)S(1)}', space=vmem, size = 0x200, scoped, tag = 'scoped memory for tpu_custom_call.1']
  %s0 = inlined_call_operand.hbm [shape: f32[2,8,32], index: 0, kind: input, shape index: {}]
  %s1 = inlined_call_operand.hbm [shape: bf16[32,32], index: 1, kind: input, shape index: {}]
  %s2 = inlined_call_operand.hbm [shape: f32[1,32], index: 2, kind: input, shape index: {}]
  %s3 = inlined_call_operand.hbm [shape: f32[1,32], index: 3, kind: input, shape index: {}]
  %s4 = inlined_call_operand.<no memory space> [shape: f32[1,1], index: 4, kind: input, shape index: {}]
  %s5 = inlined_call_operand.hbm [shape: f32[1,32], index: 5, kind: input, shape index: {}]
  %s6 = inlined_call_operand.<no memory space> [shape: f32[1,1], index: 6, kind: input, shape index: {}]
  %s7 = inlined_call_operand.hbm [shape: f32[1,1,2], index: 7, kind: output, shape index: {}]
  %s8 = sld [smem:[#allocation0]]
  $region58: #{tpu_custom_call.1} parent=0
    _
  %s10 = ssub.s32 1, %s8
  %s11 = scalar_select 0, %s10, %s8
  %v12 = vstv %s4
  %13 = vst [vmem:[#allocation2] sm:$0x1] %v12
  %v14 = vstv %s6
  %15 = vst [vmem:[#allocation3] sm:$0x1] %v14
  $region1: #{tpu_custom_call.1} parent=0
    #allocation4 [shape = 'u8[8192]{0}', space=vmem, size = 0x2000, scoped, tag = 'input window, operand 0, single buffered']
    #allocation5 [shape = 's32[1]{0}', space=sflag, size = 0x4, scoped, tag = 'scoped memory for tpu_custom_call.1']
    #allocation6 [shape = 's32[1]{0}', space=sflag, size = 0x4, scoped, tag = 'scoped memory for tpu_custom_call.1']
    #allocation7 [shape = 'u8[8192]{0}', space=vmem, size = 0x2000, scoped, tag = 'input window, operand 1, single buffered']
    #allocation8 [shape = 's32[1]{0}', space=sflag, size = 0x4, scoped, tag = 'scoped memory for tpu_custom_call.1']
    #allocation9 [shape = 'u8[512]{0}', space=vmem, size = 0x400, scoped, tag = 'input window, operand 2, single buffered']
    #allocation10 [shape = 'u8[512]{0}', space=vmem, size = 0x400, scoped, tag = 'input window, operand 3, single buffered']
    #allocation11 [shape = 's32[1]{0}', space=sflag, size = 0x4, scoped, tag = 'scoped memory for tpu_custom_call.1']
    #allocation12 [shape = 'u8[512]{0}', space=vmem, size = 0x400, scoped, tag = 'input window, operand 5, single buffered']
    #allocation13 [shape = 'u8[512]{0}', space=vmem, size = 0x400, scoped, tag = 'output window, operand 0, single buffered']
    %16 = vsyncpa [#allocation5], 0
    %17 = vsyncpa [#allocation8], 0
    %18 = vsyncpa [#allocation11], 0
    %19 = vsyncpa [#allocation6], 0
    // Predicated region
    $region2: #{tpu_custom_call.1} parent=1 // pred_check
      _
    $region3: #{tpu_custom_call.1} parent=1 // pred_check_branch
      %21 = sbr.rel (0) target = $region5
    $region4: #{tpu_custom_call.1} parent=1 // pred_region
      %s23 = ssub.s32 256, 256
      %24 = vsyncadd [#allocation5], %s23
      %s25 = sshll.u32 [#allocation4], 4
      %s26 = int_to_ptr.vmem [resolvable:$true] %s25
      %31 = dma.hbm_to_vmem [thread:$0]  %s0, 256, %s26, [#allocation5], 128, 128, 8
    $region5: #{tpu_custom_call.1} parent=1 // pred_fallthru
      _
    // Predicated region
    $region6: #{tpu_custom_call.1} parent=1 // pred_check
      _
    $region7: #{tpu_custom_call.1} parent=1 // pred_check_branch
      %33 = sbr.rel (0) target = $region9
    $region8: #{tpu_custom_call.1} parent=1 // pred_region
      %s35 = ssub.s32 256, 256
      %36 = vsyncadd [#allocation8], %s35
      %s37 = sshll.u32 [#allocation7], 4
      %s38 = int_to_ptr.vmem [resolvable:$true] %s37
      %43 = dma.hbm_to_vmem [thread:$0]  %s1, 256, %s38, [#allocation8], 64, 64, 4
    $region9: #{tpu_custom_call.1} parent=1 // pred_fallthru
      _
    // Predicated region
    $region10: #{tpu_custom_call.1} parent=1 // pred_check
      _
    $region11: #{tpu_custom_call.1} parent=1 // pred_check_branch
      %45 = sbr.rel (0) target = $region13
    $region12: #{tpu_custom_call.1} parent=1 // pred_region
      %s47 = ssub.s32 16, 16
      %48 = vsyncadd [#allocation8], %s47
      %s50 = sshll.u32 [#allocation9], 4
      %s51 = int_to_ptr.vmem [resolvable:$true] %s50
      %53 = dma.hbm_to_vmem [thread:$0]  %s2, 16, %s51, [#allocation8]
    $region13: #{tpu_custom_call.1} parent=1 // pred_fallthru
      _
    // Predicated region
    $region14: #{tpu_custom_call.1} parent=1 // pred_check
      _
    $region15: #{tpu_custom_call.1} parent=1 // pred_check_branch
      %55 = sbr.rel (0) target = $region17
    $region16: #{tpu_custom_call.1} parent=1 // pred_region
      %s57 = ssub.s32 16, 16
      %58 = vsyncadd [#allocation11], %s57
      %s60 = sshll.u32 [#allocation10], 4
      %s61 = int_to_ptr.vmem [resolvable:$true] %s60
      %63 = dma.hbm_to_vmem [thread:$0]  %s3, 16, %s61, [#allocation11]
    $region17: #{tpu_custom_call.1} parent=1 // pred_fallthru
      _
    // Predicated region
    $region18: #{tpu_custom_call.1} parent=1 // pred_check
      _
    $region19: #{tpu_custom_call.1} parent=1 // pred_check_branch
      %65 = sbr.rel (0) target = $region21
    $region20: #{tpu_custom_call.1} parent=1 // pred_region
      _
    $region21: #{tpu_custom_call.1} parent=1 // pred_fallthru
      _
    // Predicated region
    $region22: #{tpu_custom_call.1} parent=1 // pred_check
      _
    $region23: #{tpu_custom_call.1} parent=1 // pred_check_branch
      %67 = sbr.rel (0) target = $region25
    $region24: #{tpu_custom_call.1} parent=1 // pred_region
      %s69 = ssub.s32 16, 16
      %70 = vsyncadd [#allocation11], %s69
      %s72 = sshll.u32 [#allocation12], 4
      %s73 = int_to_ptr.vmem [resolvable:$true] %s72
      %75 = dma.hbm_to_vmem [thread:$0]  %s5, 16, %s73, [#allocation11]
    $region25: #{tpu_custom_call.1} parent=1 // pred_fallthru
      _
    // Predicated region
    $region26: #{tpu_custom_call.1} parent=1 // pred_check
      _
    $region27: #{tpu_custom_call.1} parent=1 // pred_check_branch
      %77 = sbr.rel (0) target = $region29
    $region28: #{tpu_custom_call.1} parent=1 // pred_region
      _
    $region29: #{tpu_custom_call.1} parent=1 // pred_fallthru
      _
    // Predicated region
    $region30: #{tpu_custom_call.1} parent=1 // pred_check
      _
    $region31: #{tpu_custom_call.1} parent=1 // pred_check_branch
      %79 = sbr.rel (0) target = $region33
    $region32: #{tpu_custom_call.1} parent=1 // pred_region
      %80 = dma.done [#allocation5], 256
    $region33: #{tpu_custom_call.1} parent=1 // pred_fallthru
      _
    // Predicated region
    $region34: #{tpu_custom_call.1} parent=1 // pred_check
      _
    $region35: #{tpu_custom_call.1} parent=1 // pred_check_branch
      %82 = sbr.rel (0) target = $region37
    $region36: #{tpu_custom_call.1} parent=1 // pred_region
      %83 = dma.done [#allocation8], 256
    $region37: #{tpu_custom_call.1} parent=1 // pred_fallthru
      _
    // Predicated region
    $region38: #{tpu_custom_call.1} parent=1 // pred_check
      _
    $region39: #{tpu_custom_call.1} parent=1 // pred_check_branch
      %85 = sbr.rel (0) target = $region41
    $region40: #{tpu_custom_call.1} parent=1 // pred_region
      %86 = dma.done [#allocation8], 16
    $region41: #{tpu_custom_call.1} parent=1 // pred_fallthru
      _
    // Predicated region
    $region42: #{tpu_custom_call.1} parent=1 // pred_check
      _
    $region43: #{tpu_custom_call.1} parent=1 // pred_check_branch
      %88 = sbr.rel (0) target = $region45
    $region44: #{tpu_custom_call.1} parent=1 // pred_region
      %89 = dma.done [#allocation11], 16
    $region45: #{tpu_custom_call.1} parent=1 // pred_fallthru
      _
    // Predicated region
    $region46: #{tpu_custom_call.1} parent=1 // pred_check
      _
    $region47: #{tpu_custom_call.1} parent=1 // pred_check_branch
      %91 = sbr.rel (0) target = $region49
    $region48: #{tpu_custom_call.1} parent=1 // pred_region
      %92 = dma.done [#allocation11], 16
    $region49: #{tpu_custom_call.1} parent=1 // pred_fallthru
      _
    %v94 = vld [vmem:[#allocation4] sm:$0xff]
    %v95 = vld [vmem:[#allocation4 + $0x8] sm:$0xff]
    %v96 = vpack.c.bf16 %v95, %v94
    %v97 = vld [vmem:[#allocation7] sm:$0xf]
    %v98 = vld [vmem:[#allocation7 + $0x4] sm:$0xf]
    %v99 = vld [vmem:[#allocation7 + $0x8] sm:$0xf]
    %v100 = vld [vmem:[#allocation7 + $0xc] sm:$0xf]
    %v101 = vld [vmem:[#allocation9] sm:$0x1]
    %v103 = vlaneseq
    %v104 = vshrl.u32 %v103, 7
    %v105 = vsub.s32 0, %v104
    %v106 = vrot.slane %v101, %v105
    %v112 = vunpack.c.l.b16 %v97
    %v113 = vunpack.c.l.b16 %v98
    %v114 = vunpack.c.l.b16 %v99
    %v115 = vunpack.c.l.b16 %v100
    %v116 = vpack.c.b16 %v113, %v112
    %v117 = vpack.c.b16 %v115, %v114
    %vm120 = vcmask 261120
    %v122 = vsel %vm120, %v96, 0
    %124 = vmatprep.subr.bf16.mxu0 0
    %125 = vmatpush1.bf16.msra.mxu0 %v116
    %126 = vmatprep.subr.bf16.mxu0 0
    %127 = vmatpush1.bf16.msra.mxu0 %v117
    %128 = vmatprep.subr.bf16.mxu0 0
    %129 = vmatpush1.bf16.msra.mxu0 0
    %130 = vmatprep.subr.bf16.mxu0 0
    %131 = vmatpush1.bf16.msra.mxu0 0
    %132 = vmatprep.subr.bf16.mxu0 0
    %133 = vmatpush1.bf16.msra.mxu0 0
    %134 = vmatprep.subr.bf16.mxu0 0
    %135 = vmatpush1.bf16.msra.mxu0 0
    %136 = vmatprep.subr.bf16.mxu0 0
    %137 = vmatpush1.bf16.msra.mxu0 0
    %138 = vmatprep.subr.bf16.mxu0 0
    %139 = vmatpush1.bf16.msra.mxu0 0
    %140 = vmatprep.subr.bf16.mxu0 0
    %141 = vmatpush1.bf16.msra.mxu0 0
    %142 = vmatprep.subr.bf16.mxu0 0
    %143 = vmatpush1.bf16.msra.mxu0 0
    %144 = vmatprep.subr.bf16.mxu0 0
    %145 = vmatpush1.bf16.msra.mxu0 0
    %146 = vmatprep.subr.bf16.mxu0 0
    %147 = vmatpush1.bf16.msra.mxu0 0
    %148 = vmatprep.subr.bf16.mxu0 0
    %149 = vmatpush1.bf16.msra.mxu0 0
    %150 = vmatprep.subr.bf16.mxu0 0
    %151 = vmatpush1.bf16.msra.mxu0 0
    %152 = vmatprep.subr.bf16.mxu0 0
    %153 = vmatpush1.bf16.msra.mxu0 0
    %154 = vmatprep.subr.bf16.mxu0 0
    %155 = vmatpush1.bf16.msra.mxu0 0
    %156 = vmatprep.mubr.bf16.mxu0 0
    %157 = vmatmul.mubr.bf16.gmra.mrb[0].mxu0 %v122
    %v158 = vpop.f32.mrb[0].mxu0
    %v159 = vadd.f32 %v106, %v158
    %v160 = vpop.f32.mrb[0].mxu0
    %v161 = vpop.f32.mrb[0].mxu0
    %v162 = vadd.f32 %v106, %v161
    %v163 = vpop.f32.mrb[0].mxu0
    %164 = vdwg.mxu0
    %v165 = vtanh.pop %v159
    %v166 = vtanh.pop %v162
    %v167 = vld [vmem:[#allocation10] sm:$0x1]
    %v169 = vlaneseq
    %v170 = vshrl.u32 %v169, 7
    %v171 = vsub.s32 0, %v170
    %v172 = vrot.slane %v167, %v171
    %v174 = vmul.f32 %v165, %v172
    %v175 = vmul.f32 %v166, %v172
    %v176 = vsel %vm120, %v174, 0.0
    %177 = vadd.xlane.f32.xlu0 %v176
    %v178 = vpop.xlane.xlu0 %177
    %v179 = vsel %vm120, %v175, 0.0
    %180 = vadd.xlane.f32.xlu0 %v179
    %v181 = vpop.xlane.xlu0 %180
    %v182 = vld [vmem:[#allocation2] sm:$0x1]
    %s183 = vtos %v182
    %v184 = vstv %s183
    %v185 = vadd.f32 %v178, %v184
    %v186 = vadd.f32 %v181, %v184
    %v187 = vrot.slane %v185, 4
    %v188 = vmax.f32 %v185, %v187
    %v189 = vrot.slane %v188, 2
    %v190 = vmax.f32 %v188, %v189
    %v191 = vrot.slane %v190, 1
    %v192 = vmax.f32 %v190, %v191
    %v193 = vrot.slane %v186, 4
    %v194 = vmax.f32 %v186, %v193
    %v195 = vrot.slane %v194, 2
    %v196 = vmax.f32 %v194, %v195
    %v197 = vrot.slane %v196, 1
    %v198 = vmax.f32 %v196, %v197
    %v199 = vsub.f32 %v185, %v192
    %v200 = vsub.f32 %v186, %v198
    %v201 = vmul.f32 %v199, 1.442695
    %v202 = vpow.pop %v201
    %v203 = vmul.f32 %v200, 1.442695
    %v204 = vpow.pop %v203
    %v205 = vrot.slane %v202, 4
    %v206 = vadd.f32 %v202, %v205
    %v207 = vrot.slane %v206, 2
    %v208 = vadd.f32 %v206, %v207
    %v209 = vrot.slane %v208, 1
    %v210 = vadd.f32 %v208, %v209
    %v211 = vrot.slane %v204, 4
    %v212 = vadd.f32 %v204, %v211
    %v213 = vrot.slane %v212, 2
    %v214 = vadd.f32 %v212, %v213
    %v215 = vrot.slane %v214, 1
    %v216 = vadd.f32 %v214, %v215
    %v217 = vrcp.pop %v210
    %v218 = vrcp.pop %v216
    %v219 = vmul.f32 %v202, %v217
    %v220 = vmul.f32 %v204, %v218
    %v221 = vmul.f32 %v219, %v94
    %v222 = vmul.f32 %v220, %v95
    %v223 = vsel %vm120, %v221, 0.0
    %v224 = vrot.slane %v223, 4
    %v225 = vadd.f32 %v223, %v224
    %v226 = vrot.slane %v225, 2
    %v227 = vadd.f32 %v225, %v226
    %v228 = vrot.slane %v227, 1
    %v229 = vadd.f32 %v227, %v228
    %v230 = vsel %vm120, %v222, 0.0
    %v231 = vrot.slane %v230, 4
    %v232 = vadd.f32 %v230, %v231
    %v233 = vrot.slane %v232, 2
    %v234 = vadd.f32 %v232, %v233
    %v235 = vrot.slane %v234, 1
    %v236 = vadd.f32 %v234, %v235
    %v237 = vld [vmem:[#allocation12] sm:$0x1]
    %v239 = vlaneseq
    %v240 = vshrl.u32 %v239, 7
    %v241 = vsub.s32 0, %v240
    %v242 = vrot.slane %v237, %v241
    %v244 = vmul.f32 %v229, %v242
    %v245 = vmul.f32 %v236, %v242
    %v248 = vrot.slane %v245, 7
    %vm249 = vcmask 1041409
    %v250 = vsel %vm249, %v248, %v244
    %vm252 = vcmask 254976
    %v253 = vsel %vm252, %v250, 0.0
    %254 = vadd.xlane.f32.xlu0 %v253
    %v255 = vpop.xlane.xlu0 %254
    %v256 = vld [vmem:[#allocation3] sm:$0x1]
    %s257 = vtos %v256
    %v258 = vstv %s257
    %v259 = vadd.f32 %v255, %v258
    %v261 = vlaneseq
    %v262 = vand.u32 %v261, 127
    %v263 = vlaneseq
    %v264 = vshrl.u32 %v263, 7
    %v265 = vsub.s32 %v262, %v264
    %v266 = vrot.slane %v259, %v265
    %vm268 = vcmask 8192
    %269 = vst.msk [vmem:[#allocation13] sm:$0x1] %vm268, %v266
    // Predicated region
    $region50: #{tpu_custom_call.1} parent=1 // pred_check
      _
    $region51: #{tpu_custom_call.1} parent=1 // pred_check_branch
      %271 = sbr.rel (0) target = $region53
    $region52: #{tpu_custom_call.1} parent=1 // pred_region
      %s273 = ssub.s32 16, 16
      %274 = vsyncadd [#allocation6], %s273
      %s276 = sshll.u32 [#allocation13], 4
      %s277 = int_to_ptr.vmem [resolvable:$true] %s276
      %279 = dma.vmem_to_hbm [thread:$0]  %s277, 16, %s7, [#allocation6]
    $region53: #{tpu_custom_call.1} parent=1 // pred_fallthru
      _
    // Predicated region
    $region54: #{tpu_custom_call.1} parent=1 // pred_check
      _
    $region55: #{tpu_custom_call.1} parent=1 // pred_check_branch
      %281 = sbr.rel (0) target = $region57
    $region56: #{tpu_custom_call.1} parent=1 // pred_region
      %282 = dma.done [#allocation6], 16
    $region57: #{tpu_custom_call.1} parent=1 // pred_fallthru
      _
    %283 = vsyncpa [#allocation5], 1
    %284 = vsyncpa [#allocation8], 1
    %285 = vsyncpa [#allocation11], 1
    %286 = vsyncpa [#allocation6], 1

</llo_original>
